<compile_context>
chip_gen: v6e
topology: v6e:2x2x1
jax: 0.10.0
libtpu: 0.0.40
codegen_flags: <defaults>
</compile_context>

<pallas_src>
import jax
import jax.numpy as jnp
from jax.experimental import pallas as pl
from jax.experimental.pallas import tpu as pltpu


_VMEM_LIMIT_BYTES = 48 * 1024 * 1024   # explicit scoped-VMEM cap: safe on v5e/v6e/v7x
_VMEM_TILE_BUDGET = 36 * 1024 * 1024   # target live footprint for the streaming tiles


def _cdiv(a, b):
    return -(-a // b)


def _round_up(x, m):
    return _cdiv(x, m) * m


# ----------------------------------------------------------------------------
# Fused conv1x1 + PixelShuffle(2) kernel (NHWC / pixels-on-sublanes layout)
# ----------------------------------------------------------------------------

def _updsample_kernel(x_ref, w_ref, o_ref):
    """x_ref: (TM, C)  input pixels, TM = TH*W, channels on lanes
    w_ref: (C, 2C)     pre-permuted + concatenated conv weight
    o_ref: (TH, 2, W, C) shuffled output block (row-major == NHWC output)."""
    th, _, wpix, c = o_ref.shape
    x = x_ref[...]
    if x.dtype != w_ref.dtype:
        # dtype cast happens in-register, after the HBM read (no extra HBM pass)
        x = x.astype(w_ref.dtype)
    # Single MXU matmul for both output sub-pixel rows, f32 accumulation.
    y = jnp.dot(x, w_ref[...], preferred_element_type=jnp.float32)
    y = y.astype(o_ref.dtype)
    # (TM, C) -> (TH, W, C): pure sublane split (W % 8 == 0), lane dim unchanged.
    o_ref[:, 0, :, :] = y[:, :c].reshape(th, wpix, c)
    o_ref[:, 1, :, :] = y[:, c:].reshape(th, wpix, c)


def _choose_row_tile(NH, W, C, in_dtype, out_dtype, w_dtype):
    """Pick TH = input image rows per grid step from a VMEM footprint model."""
    in_isz = jnp.dtype(in_dtype).itemsize
    out_isz = jnp.dtype(out_dtype).itemsize
    w_isz = jnp.dtype(w_dtype).itemsize
    lane_c = _round_up(C, 128)                       # lane padding of VMEM tiles
    in_row = _round_up(W, 8) * lane_c * in_isz       # (W, C) slab per image row
    out_row = 2 * _round_up(W, 8) * lane_c * out_isz  # (2, W, 2*Cout) slab per row
    w_bytes = 2 * _round_up(C, 8) * _round_up(2 * C, 128) * w_isz  # dbl-buffered wgt
    budget = max(_VMEM_TILE_BUDGET - w_bytes, in_row + out_row)
    th_max = max(1, budget // (2 * (in_row + out_row)))  # x2: stream double-buffer
    if NH <= th_max:
        # Whole problem fits one tile; still take 2 steps so in/out DMA overlap
        # and both v7x TensorCores get work.
        return NH if NH < 2 else _cdiv(NH, 2)
    # Multiple tiles: prefer an even grid (v7x megacore) of >= 4 steps.
    g = max(_cdiv(NH, th_max), 4)
    if g % 2:
        g += 1
    for g_try in (g, g + 2, g + 4):
        th = _cdiv(NH, g_try)
        if _cdiv(NH, th) % 2 == 0:
            return th
    return _cdiv(NH, g)


def up_dsample_nhwc(x_nhwc, w_torch, *, compute_dtype=None, out_dtype=None):
    """Fused Conv2d(C, 2C, 1, bias=False) + PixelShuffle(2) in NHWC.

    Recommended TPU entry point: no layout passes around the kernel (input and
    output reshapes are row-major preserving, i.e. free).

    x_nhwc:  (N, H, W, C)
    w_torch: (2C, C)  -- PyTorch Conv2d weight with the 1x1 spatial dims squeezed
    returns: (N, 2H, 2W, C // 2)
    """
    N, H, W, C = x_nhwc.shape
    if w_torch.shape != (2 * C, C):
        raise ValueError(f"weight shape {w_torch.shape} != {(2 * C, C)}")
    if C % 2:
        raise ValueError("PixelShuffle(2) after Conv2d(C, 2C, 1) needs even C")
    # TODO(synk): pad W to a multiple of 8 for odd widths (e.g. W=14); as written
    # the in-kernel (TH*W, C) -> (TH, W, C) reshape must be a pure sublane split.
    if W % 8:
        raise ValueError("W must be a multiple of 8 for this kernel")
    Cout = C // 2
    compute_dtype = x_nhwc.dtype if compute_dtype is None else jnp.dtype(compute_dtype)
    out_dtype = compute_dtype if out_dtype is None else jnp.dtype(out_dtype)

    # Fold the pixel shuffle into the weight: one (C, 2C) matrix whose columns
    # are ordered (i, j, co), so the matmul output is already in shuffled order.
    #   w_cat[k, i*C + j*Cout + co] = w_torch[co*4 + i*2 + j, k]
    w_cat = (w_torch.reshape(Cout, 2, 2, C)
             .transpose(3, 1, 2, 0)
             .reshape(C, 2 * C)
             .astype(compute_dtype))

    NH = N * H
    x2d = x_nhwc.reshape(NH * W, C)          # free: merges leading dims only

    TH = _choose_row_tile(NH, W, C, x_nhwc.dtype, out_dtype, compute_dtype)
    TM = TH * W
    grid_m = _cdiv(NH, TH)

    out5 = pl.pallas_call(
        _updsample_kernel,
        out_shape=jax.ShapeDtypeStruct((NH, 2, W, C), out_dtype),
        grid=(grid_m,),
        in_specs=[
            pl.BlockSpec((TM, C), lambda m: (m, 0)),
            # Constant index across the grid -> the pipeline fetches the weight
            # once; its (double-buffered) footprint is counted in the budget.
            pl.BlockSpec((C, 2 * C), lambda m: (0, 0)),
        ],
        out_specs=pl.BlockSpec((TH, 2, W, C), lambda m: (m, 0, 0, 0)),
        compiler_params=pltpu.CompilerParams(
            dimension_semantics=("parallel",),
            vmem_limit_bytes=_VMEM_LIMIT_BYTES),
    )(x2d, w_cat)

    # (N*H, 2, W, C) row-major == (N, 2H, 2W, Cout) row-major: free reshape.
    return out5.reshape(N, 2 * H, 2 * W, Cout)


def up_dsample_nchw(x_nchw, w_torch, **kw):
    """PyTorch-interface wrapper (NCHW in / NCHW out).

    Kept only for parity with the reference nn.Module.  The two jnp.transpose
    calls are full HBM passes and dominate this memory-bound op; on TPU the
    surrounding model should stay NHWC end-to-end and call up_dsample_nhwc.
    """
    # TODO(synk): NCHW-native variant (channels on sublanes, pixels on lanes)
    # folding the input transpose into the kernel; the shuffled NCHW output
    # still needs a lane interleave, so NHWC end-to-end remains the fast path.
    x_nhwc = jnp.transpose(x_nchw, (0, 2, 3, 1))
    y_nhwc = up_dsample_nhwc(x_nhwc, w_torch, **kw)
    return jnp.transpose(y_nhwc, (0, 3, 1, 2))


# ----------------------------------------------------------------------------
# Pure-JAX reference (mirrors torch Conv2d 1x1 + nn.PixelShuffle semantics)
# ----------------------------------------------------------------------------

def ref_up_dsample_nchw(x_nchw, w_torch):
    y = jnp.einsum('nkhw,ok->nohw', x_nchw, w_torch, precision='highest')
    n, c4, h, w = y.shape
    c = c4 // 4
    y = y.reshape(n, c, 2, 2, h, w).transpose(0, 1, 4, 2, 5, 3)
    return y.reshape(n, c, 2 * h, 2 * w)


# ----------------------------------------------------------------------------

if __name__ == "__main__":
    key = jax.random.PRNGKey(0)
    kx, kw = jax.random.split(key)

    N, C, H, W = 2, 4, 16, 16
    x_nchw = jax.random.normal(kx, (N, C, H, W), jnp.float32)
    # Conv2d(C, 2C, 1, bias=False) weight, (2C, C, 1, 1) squeezed to (2C, C).
    w = 0.1 * jax.random.normal(kw, (2 * C, C), jnp.float32)

    ref_nchw = ref_up_dsample_nchw(x_nchw, w)
    ref_nhwc = jnp.transpose(ref_nchw, (0, 2, 3, 1))

    # 1) Primary transpose-free NHWC path (f32).
    x_nhwc = jnp.transpose(x_nchw, (0, 2, 3, 1))     # demo data prep only
    out_nhwc = jax.block_until_ready(jax.jit(up_dsample_nhwc)(x_nhwc, w))
    assert out_nhwc.shape == (N, 2 * H, 2 * W, C // 2)
    err = float(jnp.max(jnp.abs(out_nhwc - ref_nhwc)))
    assert err < 1e-3, f"NHWC fused kernel mismatch vs reference: {err}"

    # 2) PyTorch-interface parity (NCHW in / NCHW out).
    out_nchw = jax.block_until_ready(jax.jit(up_dsample_nchw)(x_nchw, w))
    assert out_nchw.shape == (N, C // 2, 2 * H, 2 * W)
    err = float(jnp.max(jnp.abs(out_nchw - ref_nchw)))
    assert err < 1e-3, f"NCHW wrapper mismatch vs reference: {err}"

    # 3) bf16 end-to-end (bf16 HBM read, f32 MXU accumulation, bf16 HBM write).
    out_bf16 = jax.block_until_ready(
        jax.jit(up_dsample_nhwc)(x_nhwc.astype(jnp.bfloat16), w))
    assert out_bf16.dtype == jnp.bfloat16
    err = float(jnp.max(jnp.abs(out_bf16.astype(jnp.float32) - ref_nhwc)))
    assert err < 5e-2, f"bf16 path mismatch too large: {err}"

    print("KERNEL_OK")
</pallas_src>

<mosaic_0001>
module attributes {stable_mosaic.version = 11 : i64} {
  func.func @_updsample_kernel(%arg0: i32, %arg1: memref<256x4xf32, #tpu.memory_space<vmem>>, %arg2: memref<4x8xf32, #tpu.memory_space<vmem>>, %arg3: memref<16x2x16x4xf32, #tpu.memory_space<vmem>>) attributes {dimension_semantics = [#tpu.dimension_semantics<parallel>], iteration_bounds = array<i64: 2>, scalar_prefetch = 0 : i64, scratch_operands = 0 : i64, tpu.core_type = #tpu.core_type<tc>, window_params = [{transform_indices = @transform_0, window_bounds = array<i64: 256, 4>}, {pipeline_mode = #tpu.pipeline_mode<synchronous>, transform_indices = @transform_1, window_bounds = array<i64: 4, 8>}, {transform_indices = @transform_2, window_bounds = array<i64: 16, 2, 16, 4>}]} {
    %c0 = arith.constant 0 : index
    %c0_0 = arith.constant 0 : index
    %0 = vector.load %arg1[%c0, %c0_0] : memref<256x4xf32, #tpu.memory_space<vmem>>, vector<256x4xf32>
    %c0_1 = arith.constant 0 : index
    %c0_2 = arith.constant 0 : index
    %1 = vector.load %arg2[%c0_1, %c0_2] : memref<4x8xf32, #tpu.memory_space<vmem>>, vector<4x8xf32>
    %cst = arith.constant dense<0.000000e+00> : vector<256x8xf32>
    %2 = tpu.matmul %0, %1, %cst {dimension_numbers = #tpu.dot_dimension_numbers<[1], [0], [0], [1], [0, 0, 1, 1], [], []>} : vector<256x4xf32>, vector<4x8xf32>, vector<256x8xf32> -> vector<256x8xf32>
    %3 = vector.extract_strided_slice %2 {offsets = [0, 0], sizes = [256, 4], strides = [1, 1]} : vector<256x8xf32> to vector<256x4xf32>
    %4 = vector.shape_cast %3 : vector<256x4xf32> to vector<16x16x4xf32>
    %c0_3 = arith.constant 0 : index
    %c0_4 = arith.constant 0 : index
    %c0_5 = arith.constant 0 : index
    %c0_6 = arith.constant 0 : index
    %5 = vector.load %arg3[%c0_3, %c0_4, %c0_5, %c0_6] : memref<16x2x16x4xf32, #tpu.memory_space<vmem>>, vector<16x1x16x4xf32>
    %6 = vector.shape_cast %5 : vector<16x1x16x4xf32> to vector<16x16x4xf32>
    %7 = vector.shape_cast %4 : vector<16x16x4xf32> to vector<16x1x16x4xf32>
    tpu.vector_store %arg3[%c0_3, %c0_4, %c0_5, %c0_6], %7 {strides = array<i32>} : memref<16x2x16x4xf32, #tpu.memory_space<vmem>>, vector<16x1x16x4xf32>,
    %8 = vector.extract_strided_slice %2 {offsets = [0, 4], sizes = [256, 4], strides = [1, 1]} : vector<256x8xf32> to vector<256x4xf32>
    %9 = vector.shape_cast %8 : vector<256x4xf32> to vector<16x16x4xf32>
    %c0_7 = arith.constant 0 : index
    %c1 = arith.constant 1 : index
    %c0_8 = arith.constant 0 : index
    %c0_9 = arith.constant 0 : index
    %10 = vector.load %arg3[%c0_7, %c1, %c0_8, %c0_9] : memref<16x2x16x4xf32, #tpu.memory_space<vmem>>, vector<16x1x16x4xf32>
    %11 = vector.shape_cast %10 : vector<16x1x16x4xf32> to vector<16x16x4xf32>
    %12 = vector.shape_cast %9 : vector<16x16x4xf32> to vector<16x1x16x4xf32>
    tpu.vector_store %arg3[%c0_7, %c1, %c0_8, %c0_9], %12 {strides = array<i32>} : memref<16x2x16x4xf32, #tpu.memory_space<vmem>>, vector<16x1x16x4xf32>,
    return
  }
  func.func @transform_0(%arg0: i32) -> (i32, i32) {
    %c0_i32 = arith.constant 0 : i32
    %c0_i32_0 = arith.constant 0 : i32
    return %arg0, %c0_i32 : i32, i32
  }
  func.func @transform_1(%arg0: i32) -> (i32, i32) {
    %c0_i32 = arith.constant 0 : i32
    %c0_i32_0 = arith.constant 0 : i32
    %c0_i32_1 = arith.constant 0 : i32
    return %c0_i32, %c0_i32_0 : i32, i32
  }
  func.func @transform_2(%arg0: i32) -> (i32, i32, i32, i32) {
    %c0_i32 = arith.constant 0 : i32
    %c0_i32_0 = arith.constant 0 : i32
    %c0_i32_1 = arith.constant 0 : i32
    %c0_i32_2 = arith.constant 0 : i32
    return %arg0, %c0_i32, %c0_i32_0, %c0_i32_1 : i32, i32, i32, i32
  }
}

</mosaic_0001>

<llo_original>
// kernel: up_dsample_nhwc.1
$region0: #{up_dsample_nhwc.1}
  #allocation0 [shape = 'u32[]', space=smem, size = 0x4, offset = 0x4, fixed_abs, tag = 'smem constant byte address 0x4 - core index']
  #allocation1 [shape = 'u32[144,128]{1,0:T(1,128)}', space=vmem, size = 0x12000, scoped, tag = 'internal scratch']
  %s0 = inlined_call_operand.vmem [shape: f32[512,4], index: 0, kind: input, shape index: {}]
  %s1 = inlined_call_operand.vmem [shape: f32[4,8], index: 1, kind: input, shape index: {}]
  %s2 = inlined_call_operand.vmem [shape: f32[32,2,16,4], index: 2, kind: output, shape index: {}]
  %s3 = sld [smem:[#allocation0]]
  $region41: #{up_dsample_nhwc.1} parent=0
    _
  %s5 = ssub.s32 1, %s3
  %s6 = scalar_select 0, %s5, %s3
  loop: start=0, step=1, limit=4
  $region2: #{up_dsample_nhwc.1} parent=0 // loop_pre_header
    _
  $region3: #{up_dsample_nhwc.1} parent=0 // loop_header
    %s8 = sphi 0, %s12
    %p9 = scmp.ge.s32.totalorder %s8, 4
    %s18 = sphi 0, %s20
    %s21 = sphi 0, %s18
    %s22 = sphi 0, %s21
    %s38 = sphi 0, %s22
    %s42 = sphi 0, %s42
    %s44 = sphi 0, %s42
    %s45 = sphi 0, %s44
    %s59 = sphi 0, %s45
    %s65 = sphi 0, %s67
    %s68 = sphi 0, %s65
    %s69 = sphi 0, %s68
    %s85 = sphi 0, %s69
  $region4: #{up_dsample_nhwc.1} parent=0 // loop_header_branch
    %11 = sbr.rel (%p9) target = $region8
  $region5: #{up_dsample_nhwc.1} parent=0 // loop_body
    %s13 = ssub.s32 %s8, 1
    %s14 = ssub.s32 %s8, 2
    %s15 = sadd.s32 %s8, 1
    %s16 = ssub.s32 %s8, %s15
    %p17 = scmp.eq.s32.totalorder %s16, 0
    %s19 = sadd.s32 %s18, 1
    %s20 = scalar_select %p17, %s18, %s19
    %p23 = pneg %p17
    %p24 = scmp.eq.s32.totalorder %s8, 1
    %p25 = por %p23, %p24
    %p26 = scmp.ne.s32.totalorder %s18, %s21
    %p27 = scmp.eq.s32.totalorder %s8, 0
    %p28 = por %p26, %p27
    %p29 = scmp.ne.s32.totalorder %s18, %s21
    %p30 = scmp.eq.s32.totalorder %s13, 1
    %p31 = por %p29, %p30
    %p32 = scmp.ne.s32.totalorder %s21, %s22
    %p33 = scmp.eq.s32.totalorder %s13, 0
    %p34 = por %p32, %p33
    %p35 = scmp.ne.s32.totalorder %s21, %s22
    %p36 = scmp.eq.s32.totalorder %s14, 1
    %p37 = por %p35, %p36
    %p39 = scmp.ne.s32.totalorder %s22, %s38
    %p40 = scmp.eq.s32.totalorder %s14, 0
    %p41 = por %p39, %p40
    %s43 = sadd.s32 %s42, 1
    %p46 = scmp.eq.s32.totalorder %s8, 1
    %p47 = scmp.ne.s32.totalorder %s42, %s44
    %p48 = scmp.eq.s32.totalorder %s8, 0
    %p49 = por %p47, %p48
    %p50 = scmp.ne.s32.totalorder %s42, %s44
    %p51 = scmp.eq.s32.totalorder %s13, 1
    %p52 = por %p50, %p51
    %p53 = scmp.ne.s32.totalorder %s44, %s45
    %p54 = scmp.eq.s32.totalorder %s13, 0
    %p55 = por %p53, %p54
    %p56 = scmp.ne.s32.totalorder %s44, %s45
    %p57 = scmp.eq.s32.totalorder %s14, 1
    %p58 = por %p56, %p57
    %p60 = scmp.ne.s32.totalorder %s45, %s59
    %p61 = scmp.eq.s32.totalorder %s14, 0
    %p62 = por %p60, %p61
    %s63 = ssub.s32 %s8, %s15
    %p64 = scmp.eq.s32.totalorder %s63, 0
    %s66 = sadd.s32 %s65, 1
    %s67 = scalar_select %p64, %s65, %s66
    %p70 = pneg %p64
    %p71 = scmp.eq.s32.totalorder %s8, 1
    %p72 = por %p70, %p71
    %p73 = scmp.ne.s32.totalorder %s65, %s68
    %p74 = scmp.eq.s32.totalorder %s8, 0
    %p75 = por %p73, %p74
    %p76 = scmp.ne.s32.totalorder %s65, %s68
    %p77 = scmp.eq.s32.totalorder %s13, 1
    %p78 = por %p76, %p77
    %p79 = scmp.ne.s32.totalorder %s68, %s69
    %p80 = scmp.eq.s32.totalorder %s13, 0
    %p81 = por %p79, %p80
    %p82 = scmp.ne.s32.totalorder %s68, %s69
    %p83 = scmp.eq.s32.totalorder %s14, 1
    %p84 = por %p82, %p83
    %p86 = scmp.ne.s32.totalorder %s69, %s85
    %p87 = scmp.eq.s32.totalorder %s14, 0
    %p88 = por %p86, %p87
    %p89 = scmp.le.s32.totalorder 1, %s8
    %p90 = scmp.lt.s32.totalorder %s8, 3
    %p91 = pnand %p89, %p90
    %p92 = pneg %p91
    // Predicated region
    $region9: #{up_dsample_nhwc.1} parent=5 // pred_check
      _
    $region10: #{up_dsample_nhwc.1} parent=5 // pred_check_branch
      %94 = sbr.rel (%p91) target = $region12
    $region11: #{up_dsample_nhwc.1} parent=5 // pred_region
      %s95 = ssub.s32 %s8, 1
      // Predicated region
      $region13: #{up_dsample_nhwc.1} parent=11 // pred_check
        %p96 = pneg %p55
      $region14: #{up_dsample_nhwc.1} parent=11 // pred_check_branch
        %98 = sbr.rel (%p96) target = $region16
      $region15: #{up_dsample_nhwc.1} parent=11 // pred_region
        _
      $region16: #{up_dsample_nhwc.1} parent=11 // pred_fallthru
        _
    $region12: #{up_dsample_nhwc.1} parent=5 // pred_fallthru
      _
    %p99 = scmp.lt.s32.totalorder %s8, 2
    // Predicated region
    $region17: #{up_dsample_nhwc.1} parent=5 // pred_check
      %p100 = pneg %p99
    $region18: #{up_dsample_nhwc.1} parent=5 // pred_check_branch
      %102 = sbr.rel (%p100) target = $region20
    $region19: #{up_dsample_nhwc.1} parent=5 // pred_region
      // Predicated region
      $region21: #{up_dsample_nhwc.1} parent=19 // pred_check
        %p103 = pneg %p28
      $region22: #{up_dsample_nhwc.1} parent=19 // pred_check_branch
        %105 = sbr.rel (%p103) target = $region24
      $region23: #{up_dsample_nhwc.1} parent=19 // pred_region
        %s106 = smul.u32 32, %s8
        %p107 = scmp.lt.s32.totalorder %s106, 63
        %s108 = scalar_select %p107, %s106, 63
        %s109 = smul.addr %s108, 8
        %s110 = scalar_lea.vmem %s0, %s109
        %s111 = smul.u32 32, %s8
      $region24: #{up_dsample_nhwc.1} parent=19 // pred_fallthru
        _
    $region20: #{up_dsample_nhwc.1} parent=5 // pred_fallthru
      _
    %p112 = scmp.le.s32.totalorder 1, %s8
    %p113 = scmp.lt.s32.totalorder %s8, 3
    %p114 = pnand %p112, %p113
    %p115 = pneg %p114
    // Predicated region
    $region25: #{up_dsample_nhwc.1} parent=5 // pred_check
      _
    $region26: #{up_dsample_nhwc.1} parent=5 // pred_check_branch
      %117 = sbr.rel (%p114) target = $region28
    $region27: #{up_dsample_nhwc.1} parent=5 // pred_region
      %s118 = ssub.s32 %s8, 1
      %s119 = smul.u32 32, %s13
      %p120 = scmp.lt.s32.totalorder %s119, 63
      %s121 = scalar_select %p120, %s119, 63
      %s122 = smul.addr %s121, 8
      %s123 = scalar_lea.vmem %s0, %s122
      %p124 = pneg %p34
      %p125 = pneg %p31
      %p126 = pneg %p55
      %p127 = pneg %p52
      %p128 = pneg %p81
      %p129 = pneg %p78
      %s130 = smul.u32 16, %s13
      %p131 = scmp.lt.s32.totalorder %s130, 31
      %s132 = scalar_select %p131, %s130, 31
      %s133 = smul.addr %s132, 4
      %s134 = smul.addr %s133, 8
      %s135 = scalar_lea.vmem %s2, %s134
      %s136 = smul.u32 32, %s13
      %p137 = scmp.lt.s32.totalorder %s136, 63
      %s138 = scalar_select %p137, %s136, 63
      %s139 = smul.addr %s138, 8
      %s140 = scalar_lea.vmem %s0, %s139
      %s141 = smul.u32 32, %s13
      %s142 = smul.u32 16, %s13
      %p143 = scmp.lt.s32.totalorder %s142, 31
      %s144 = scalar_select %p143, %s142, 31
      %s145 = smul.addr %s144, 4
      %s146 = smul.addr %s145, 8
      %s147 = scalar_lea.vmem %s2, %s146
      %s148 = smul.u32 16, %s13
      %v149 = vld [vmem:[%s140] sm:$0xff]
      %v150 = vld [vmem:[%s140 + $0x8] sm:$0xff]
      %v151 = vld [vmem:[%s140 + $0x10] sm:$0xff]
      %v152 = vld [vmem:[%s140 + $0x18] sm:$0xff]
      %v153 = vld [vmem:[%s140 + $0x20] sm:$0xff]
      %v154 = vld [vmem:[%s140 + $0x28] sm:$0xff]
      %v155 = vld [vmem:[%s140 + $0x30] sm:$0xff]
      %v156 = vld [vmem:[%s140 + $0x38] sm:$0xff]
      %v157 = vld [vmem:[%s140 + $0x40] sm:$0xff]
      %v158 = vld [vmem:[%s140 + $0x48] sm:$0xff]
      %v159 = vld [vmem:[%s140 + $0x50] sm:$0xff]
      %v160 = vld [vmem:[%s140 + $0x58] sm:$0xff]
      %v161 = vld [vmem:[%s140 + $0x60] sm:$0xff]
      %v162 = vld [vmem:[%s140 + $0x68] sm:$0xff]
      %v163 = vld [vmem:[%s140 + $0x70] sm:$0xff]
      %v164 = vld [vmem:[%s140 + $0x78] sm:$0xff]
      %v165 = vld [vmem:[%s140 + $0x80] sm:$0xff]
      %v166 = vld [vmem:[%s140 + $0x88] sm:$0xff]
      %v167 = vld [vmem:[%s140 + $0x90] sm:$0xff]
      %v168 = vld [vmem:[%s140 + $0x98] sm:$0xff]
      %v169 = vld [vmem:[%s140 + $0xa0] sm:$0xff]
      %v170 = vld [vmem:[%s140 + $0xa8] sm:$0xff]
      %v171 = vld [vmem:[%s140 + $0xb0] sm:$0xff]
      %v172 = vld [vmem:[%s140 + $0xb8] sm:$0xff]
      %v173 = vld [vmem:[%s140 + $0xc0] sm:$0xff]
      %v174 = vld [vmem:[%s140 + $0xc8] sm:$0xff]
      %v175 = vld [vmem:[%s140 + $0xd0] sm:$0xff]
      %v176 = vld [vmem:[%s140 + $0xd8] sm:$0xff]
      %v177 = vld [vmem:[%s140 + $0xe0] sm:$0xff]
      %v178 = vld [vmem:[%s140 + $0xe8] sm:$0xff]
      %v179 = vld [vmem:[%s140 + $0xf0] sm:$0xff]
      %v180 = vld [vmem:[%s140 + $0xf8] sm:$0xff]
      %v181 = vld [vmem:[%s1] sm:$0xf]
      %vm182 = vcmask 31744
      %v184 = vsel %vm182, %v149, 0
      %v187 = vsel %vm182, %v150, 0
      %v190 = vsel %vm182, %v151, 0
      %v193 = vsel %vm182, %v152, 0
      %v196 = vsel %vm182, %v153, 0
      %v199 = vsel %vm182, %v154, 0
      %v202 = vsel %vm182, %v155, 0
      %v205 = vsel %vm182, %v156, 0
      %v208 = vsel %vm182, %v157, 0
      %v211 = vsel %vm182, %v158, 0
      %v214 = vsel %vm182, %v159, 0
      %v217 = vsel %vm182, %v160, 0
      %v220 = vsel %vm182, %v161, 0
      %v223 = vsel %vm182, %v162, 0
      %v226 = vsel %vm182, %v163, 0
      %v229 = vsel %vm182, %v164, 0
      %v232 = vsel %vm182, %v165, 0
      %v235 = vsel %vm182, %v166, 0
      %v238 = vsel %vm182, %v167, 0
      %v241 = vsel %vm182, %v168, 0
      %v244 = vsel %vm182, %v169, 0
      %v247 = vsel %vm182, %v170, 0
      %v250 = vsel %vm182, %v171, 0
      %v253 = vsel %vm182, %v172, 0
      %v256 = vsel %vm182, %v173, 0
      %v259 = vsel %vm182, %v174, 0
      %v262 = vsel %vm182, %v175, 0
      %v265 = vsel %vm182, %v176, 0
      %v268 = vsel %vm182, %v177, 0
      %v271 = vsel %vm182, %v178, 0
      %v274 = vsel %vm182, %v179, 0
      %v277 = vsel %vm182, %v180, 0
      %vm279 = vcmask 1043456
      %v281 = vsel %vm279, %v181, 0
      %283 = vmatprep.subr.mxu0 0.0
      %284 = vmatpush1.msra.mxu0 0.0
      %285 = vmatprep.subr.mxu0 0.0
      %286 = vmatpush1.msra.mxu0 0.0
      %287 = vmatprep.subr.mxu0 0.0
      %288 = vmatpush1.msra.mxu0 0.0
      %289 = vmatprep.subr.mxu0 0.0
      %290 = vmatpush1.msra.mxu0 0.0
      %291 = vmatprep.subr.mxu0 0.0
      %292 = vmatpush1.msra.mxu0 0.0
      %293 = vmatprep.subr.mxu0 0.0
      %294 = vmatpush1.msra.mxu0 0.0
      %295 = vmatprep.subr.mxu0 0.0
      %296 = vmatpush1.msra.mxu0 0.0
      %297 = vmatprep.subr.mxu0 0.0
      %298 = vmatpush1.msra.mxu0 0.0
      %299 = vmatprep.subr.mxu0 0.0
      %300 = vmatpush1.msra.mxu0 0.0
      %301 = vmatprep.subr.mxu0 0.0
      %302 = vmatpush1.msra.mxu0 0.0
      %303 = vmatprep.subr.mxu0 0.0
      %304 = vmatpush1.msra.mxu0 0.0
      %305 = vmatprep.subr.mxu0 0.0
      %306 = vmatpush1.msra.mxu0 0.0
      %307 = vmatprep.subr.mxu0 0.0
      %308 = vmatpush1.msra.mxu0 0.0
      %309 = vmatprep.subr.mxu0 0.0
      %310 = vmatpush1.msra.mxu0 0.0
      %311 = vmatprep.subr.mxu0 0.0
      %312 = vmatpush1.msra.mxu0 0.0
      %313 = vmatprep.subr.mxu0 0.0
      %314 = vmatpush1.msra.mxu0 %v281
      %315 = vmatprep.subr.mxu0 0.0
      %316 = vmatpush2.msra.mxu0 0.0
      %317 = vmatprep.subr.mxu0 0.0
      %318 = vmatpush2.msra.mxu0 0.0
      %319 = vmatprep.subr.mxu0 0.0
      %320 = vmatpush2.msra.mxu0 0.0
      %321 = vmatprep.subr.mxu0 0.0
      %322 = vmatpush2.msra.mxu0 0.0
      %323 = vmatprep.subr.mxu0 0.0
      %324 = vmatpush2.msra.mxu0 0.0
      %325 = vmatprep.subr.mxu0 0.0
      %326 = vmatpush2.msra.mxu0 0.0
      %327 = vmatprep.subr.mxu0 0.0
      %328 = vmatpush2.msra.mxu0 0.0
      %329 = vmatprep.subr.mxu0 0.0
      %330 = vmatpush2.msra.mxu0 0.0
      %331 = vmatprep.subr.mxu0 0.0
      %332 = vmatpush2.msra.mxu0 0.0
      %333 = vmatprep.subr.mxu0 0.0
      %334 = vmatpush2.msra.mxu0 0.0
      %335 = vmatprep.subr.mxu0 0.0
      %336 = vmatpush2.msra.mxu0 0.0
      %337 = vmatprep.subr.mxu0 0.0
      %338 = vmatpush2.msra.mxu0 0.0
      %339 = vmatprep.subr.mxu0 0.0
      %340 = vmatpush2.msra.mxu0 0.0
      %341 = vmatprep.subr.mxu0 0.0
      %342 = vmatpush2.msra.mxu0 0.0
      %343 = vmatprep.subr.mxu0 0.0
      %344 = vmatpush2.msra.mxu0 0.0
      %345 = vmatprep.subr.mxu0 0.0
      %346 = vmatpush2.msra.mxu0 0.0
      %347 = vmatprep.mubr.f32.mxu0 0.0
      %348 = vmatmul.mubr.f32.gmra.mxu0 %v184
      %v349 = vpop.f32.mrf.mxu0
      %v350 = vadd.f32 0.0, %v349
      %v351 = vpop.f32.mrf.mxu0
      %352 = vmatprep.mubr.f32.mxu0 0.0
      %353 = vmatmul.mubr.f32.gmra.mxu0 %v187
      %v354 = vpop.f32.mrf.mxu0
      %v355 = vadd.f32 0.0, %v354
      %v356 = vpop.f32.mrf.mxu0
      %357 = vmatprep.mubr.f32.mxu0 0.0
      %358 = vmatmul.mubr.f32.gmra.mxu0 %v190
      %v359 = vpop.f32.mrf.mxu0
      %v360 = vadd.f32 0.0, %v359
      %v361 = vpop.f32.mrf.mxu0
      %362 = vmatprep.mubr.f32.mxu0 0.0
      %363 = vmatmul.mubr.f32.gmra.mxu0 %v193
      %v364 = vpop.f32.mrf.mxu0
      %v365 = vadd.f32 0.0, %v364
      %v366 = vpop.f32.mrf.mxu0
      %367 = vmatprep.mubr.f32.mxu0 0.0
      %368 = vmatmul.mubr.f32.gmra.mxu0 %v196
      %v369 = vpop.f32.mrf.mxu0
      %v370 = vadd.f32 0.0, %v369
      %v371 = vpop.f32.mrf.mxu0
      %372 = vmatprep.mubr.f32.mxu0 0.0
      %373 = vmatmul.mubr.f32.gmra.mxu0 %v199
      %v374 = vpop.f32.mrf.mxu0
      %v375 = vadd.f32 0.0, %v374
      %v376 = vpop.f32.mrf.mxu0
      %377 = vmatprep.mubr.f32.mxu0 0.0
      %378 = vmatmul.mubr.f32.gmra.mxu0 %v202
      %v379 = vpop.f32.mrf.mxu0
      %v380 = vadd.f32 0.0, %v379
      %v381 = vpop.f32.mrf.mxu0
      %382 = vmatprep.mubr.f32.mxu0 0.0
      %383 = vmatmul.mubr.f32.gmra.mxu0 %v205
      %v384 = vpop.f32.mrf.mxu0
      %v385 = vadd.f32 0.0, %v384
      %v386 = vpop.f32.mrf.mxu0
      %387 = vmatprep.mubr.f32.mxu0 0.0
      %388 = vmatmul.mubr.f32.gmra.mxu0 %v208
      %v389 = vpop.f32.mrf.mxu0
      %v390 = vadd.f32 0.0, %v389
      %v391 = vpop.f32.mrf.mxu0
      %392 = vmatprep.mubr.f32.mxu0 0.0
      %393 = vmatmul.mubr.f32.gmra.mxu0 %v211
      %v394 = vpop.f32.mrf.mxu0
      %v395 = vadd.f32 0.0, %v394
      %v396 = vpop.f32.mrf.mxu0
      %397 = vmatprep.mubr.f32.mxu0 0.0
      %398 = vmatmul.mubr.f32.gmra.mxu0 %v214
      %v399 = vpop.f32.mrf.mxu0
      %v400 = vadd.f32 0.0, %v399
      %v401 = vpop.f32.mrf.mxu0
      %402 = vmatprep.mubr.f32.mxu0 0.0
      %403 = vmatmul.mubr.f32.gmra.mxu0 %v217
      %v404 = vpop.f32.mrf.mxu0
      %v405 = vadd.f32 0.0, %v404
      %v406 = vpop.f32.mrf.mxu0
      %407 = vmatprep.mubr.f32.mxu0 0.0
      %408 = vmatmul.mubr.f32.gmra.mxu0 %v220
      %v409 = vpop.f32.mrf.mxu0
      %v410 = vadd.f32 0.0, %v409
      %v411 = vpop.f32.mrf.mxu0
      %412 = vmatprep.mubr.f32.mxu0 0.0
      %413 = vmatmul.mubr.f32.gmra.mxu0 %v223
      %v414 = vpop.f32.mrf.mxu0
      %v415 = vadd.f32 0.0, %v414
      %v416 = vpop.f32.mrf.mxu0
      %417 = vmatprep.mubr.f32.mxu0 0.0
      %418 = vmatmul.mubr.f32.gmra.mxu0 %v226
      %v419 = vpop.f32.mrf.mxu0
      %v420 = vadd.f32 0.0, %v419
      %v421 = vpop.f32.mrf.mxu0
      %422 = vmatprep.mubr.f32.mxu0 0.0
      %423 = vmatmul.mubr.f32.gmra.mxu0 %v229
      %v424 = vpop.f32.mrf.mxu0
      %v425 = vadd.f32 0.0, %v424
      %v426 = vpop.f32.mrf.mxu0
      %427 = vmatprep.mubr.f32.mxu0 0.0
      %428 = vmatmul.mubr.f32.gmra.mxu0 %v232
      %v429 = vpop.f32.mrf.mxu0
      %v430 = vadd.f32 0.0, %v429
      %v431 = vpop.f32.mrf.mxu0
      %432 = vmatprep.mubr.f32.mxu0 0.0
      %433 = vmatmul.mubr.f32.gmra.mxu0 %v235
      %v434 = vpop.f32.mrf.mxu0
      %v435 = vadd.f32 0.0, %v434
      %v436 = vpop.f32.mrf.mxu0
      %437 = vmatprep.mubr.f32.mxu0 0.0
      %438 = vmatmul.mubr.f32.gmra.mxu0 %v238
      %v439 = vpop.f32.mrf.mxu0
      %v440 = vadd.f32 0.0, %v439
      %v441 = vpop.f32.mrf.mxu0
      %442 = vmatprep.mubr.f32.mxu0 0.0
      %443 = vmatmul.mubr.f32.gmra.mxu0 %v241
      %v444 = vpop.f32.mrf.mxu0
      %v445 = vadd.f32 0.0, %v444
      %v446 = vpop.f32.mrf.mxu0
      %447 = vmatprep.mubr.f32.mxu0 0.0
      %448 = vmatmul.mubr.f32.gmra.mxu0 %v244
      %v449 = vpop.f32.mrf.mxu0
      %v450 = vadd.f32 0.0, %v449
      %v451 = vpop.f32.mrf.mxu0
      %452 = vmatprep.mubr.f32.mxu0 0.0
      %453 = vmatmul.mubr.f32.gmra.mxu0 %v247
      %v454 = vpop.f32.mrf.mxu0
      %v455 = vadd.f32 0.0, %v454
      %v456 = vpop.f32.mrf.mxu0
      %457 = vmatprep.mubr.f32.mxu0 0.0
      %458 = vmatmul.mubr.f32.gmra.mxu0 %v250
      %v459 = vpop.f32.mrf.mxu0
      %v460 = vadd.f32 0.0, %v459
      %v461 = vpop.f32.mrf.mxu0
      %462 = vmatprep.mubr.f32.mxu0 0.0
      %463 = vmatmul.mubr.f32.gmra.mxu0 %v253
      %v464 = vpop.f32.mrf.mxu0
      %v465 = vadd.f32 0.0, %v464
      %v466 = vpop.f32.mrf.mxu0
      %467 = vmatprep.mubr.f32.mxu0 0.0
      %468 = vmatmul.mubr.f32.gmra.mxu0 %v256
      %v469 = vpop.f32.mrf.mxu0
      %v470 = vadd.f32 0.0, %v469
      %v471 = vpop.f32.mrf.mxu0
      %472 = vmatprep.mubr.f32.mxu0 0.0
      %473 = vmatmul.mubr.f32.gmra.mxu0 %v259
      %v474 = vpop.f32.mrf.mxu0
      %v475 = vadd.f32 0.0, %v474
      %v476 = vpop.f32.mrf.mxu0
      %477 = vmatprep.mubr.f32.mxu0 0.0
      %478 = vmatmul.mubr.f32.gmra.mxu0 %v262
      %v479 = vpop.f32.mrf.mxu0
      %v480 = vadd.f32 0.0, %v479
      %v481 = vpop.f32.mrf.mxu0
      %482 = vmatprep.mubr.f32.mxu0 0.0
      %483 = vmatmul.mubr.f32.gmra.mxu0 %v265
      %v484 = vpop.f32.mrf.mxu0
      %v485 = vadd.f32 0.0, %v484
      %v486 = vpop.f32.mrf.mxu0
      %487 = vmatprep.mubr.f32.mxu0 0.0
      %488 = vmatmul.mubr.f32.gmra.mxu0 %v268
      %v489 = vpop.f32.mrf.mxu0
      %v490 = vadd.f32 0.0, %v489
      %v491 = vpop.f32.mrf.mxu0
      %492 = vmatprep.mubr.f32.mxu0 0.0
      %493 = vmatmul.mubr.f32.gmra.mxu0 %v271
      %v494 = vpop.f32.mrf.mxu0
      %v495 = vadd.f32 0.0, %v494
      %v496 = vpop.f32.mrf.mxu0
      %497 = vmatprep.mubr.f32.mxu0 0.0
      %498 = vmatmul.mubr.f32.gmra.mxu0 %v274
      %v499 = vpop.f32.mrf.mxu0
      %v500 = vadd.f32 0.0, %v499
      %v501 = vpop.f32.mrf.mxu0
      %502 = vmatprep.mubr.f32.mxu0 0.0
      %503 = vmatmul.mubr.f32.gmra.mxu0 %v277
      %v504 = vpop.f32.mrf.mxu0
      %v505 = vadd.f32 0.0, %v504
      %v506 = vpop.f32.mrf.mxu0
      %507 = vdwg.mxu0
      %508 = vst.msk [vmem:[%s147] sm:$0xff] %vm182, %v350
      %509 = vst.msk [vmem:[%s147 + $0x8] sm:$0xff] %vm182, %v355
      %510 = vst.msk [vmem:[%s147 + $0x20] sm:$0xff] %vm182, %v360
      %511 = vst.msk [vmem:[%s147 + $0x28] sm:$0xff] %vm182, %v365
      %512 = vst.msk [vmem:[%s147 + $0x40] sm:$0xff] %vm182, %v370
      %513 = vst.msk [vmem:[%s147 + $0x48] sm:$0xff] %vm182, %v375
      %514 = vst.msk [vmem:[%s147 + $0x60] sm:$0xff] %vm182, %v380
      %515 = vst.msk [vmem:[%s147 + $0x68] sm:$0xff] %vm182, %v385
      %516 = vst.msk [vmem:[%s147 + $0x80] sm:$0xff] %vm182, %v390
      %517 = vst.msk [vmem:[%s147 + $0x88] sm:$0xff] %vm182, %v395
      %518 = vst.msk [vmem:[%s147 + $0xa0] sm:$0xff] %vm182, %v400
      %519 = vst.msk [vmem:[%s147 + $0xa8] sm:$0xff] %vm182, %v405
      %520 = vst.msk [vmem:[%s147 + $0xc0] sm:$0xff] %vm182, %v410
      %521 = vst.msk [vmem:[%s147 + $0xc8] sm:$0xff] %vm182, %v415
      %522 = vst.msk [vmem:[%s147 + $0xe0] sm:$0xff] %vm182, %v420
      %523 = vst.msk [vmem:[%s147 + $0xe8] sm:$0xff] %vm182, %v425
      %524 = vst.msk [vmem:[%s147 + $0x100] sm:$0xff] %vm182, %v430
      %525 = vst.msk [vmem:[%s147 + $0x108] sm:$0xff] %vm182, %v435
      %526 = vst.msk [vmem:[%s147 + $0x120] sm:$0xff] %vm182, %v440
      %527 = vst.msk [vmem:[%s147 + $0x128] sm:$0xff] %vm182, %v445
      %528 = vst.msk [vmem:[%s147 + $0x140] sm:$0xff] %vm182, %v450
      %529 = vst.msk [vmem:[%s147 + $0x148] sm:$0xff] %vm182, %v455
      %530 = vst.msk [vmem:[%s147 + $0x160] sm:$0xff] %vm182, %v460
      %531 = vst.msk [vmem:[%s147 + $0x168] sm:$0xff] %vm182, %v465
      %532 = vst.msk [vmem:[%s147 + $0x180] sm:$0xff] %vm182, %v470
      %533 = vst.msk [vmem:[%s147 + $0x188] sm:$0xff] %vm182, %v475
      %534 = vst.msk [vmem:[%s147 + $0x1a0] sm:$0xff] %vm182, %v480
      %535 = vst.msk [vmem:[%s147 + $0x1a8] sm:$0xff] %vm182, %v485
      %536 = vst.msk [vmem:[%s147 + $0x1c0] sm:$0xff] %vm182, %v490
      %537 = vst.msk [vmem:[%s147 + $0x1c8] sm:$0xff] %vm182, %v495
      %538 = vst.msk [vmem:[%s147 + $0x1e0] sm:$0xff] %vm182, %v500
      %539 = vst.msk [vmem:[%s147 + $0x1e8] sm:$0xff] %vm182, %v505
      %572 = vrot.lane.b32.xlu0 %v350, 124
      %v573 = vpop.permute.xlu0 %572
      %574 = vrot.lane.b32.xlu0 %v355, 124
      %v575 = vpop.permute.xlu0 %574
      %576 = vrot.lane.b32.xlu0 %v360, 124
      %v577 = vpop.permute.xlu0 %576
      %578 = vrot.lane.b32.xlu0 %v365, 124
      %v579 = vpop.permute.xlu0 %578
      %580 = vrot.lane.b32.xlu0 %v370, 124
      %v581 = vpop.permute.xlu0 %580
      %582 = vrot.lane.b32.xlu0 %v375, 124
      %v583 = vpop.permute.xlu0 %582
      %584 = vrot.lane.b32.xlu0 %v380, 124
      %v585 = vpop.permute.xlu0 %584
      %586 = vrot.lane.b32.xlu0 %v385, 124
      %v587 = vpop.permute.xlu0 %586
      %588 = vrot.lane.b32.xlu0 %v390, 124
      %v589 = vpop.permute.xlu0 %588
      %590 = vrot.lane.b32.xlu0 %v395, 124
      %v591 = vpop.permute.xlu0 %590
      %592 = vrot.lane.b32.xlu0 %v400, 124
      %v593 = vpop.permute.xlu0 %592
      %594 = vrot.lane.b32.xlu0 %v405, 124
      %v595 = vpop.permute.xlu0 %594
      %596 = vrot.lane.b32.xlu0 %v410, 124
      %v597 = vpop.permute.xlu0 %596
      %598 = vrot.lane.b32.xlu0 %v415, 124
      %v599 = vpop.permute.xlu0 %598
      %600 = vrot.lane.b32.xlu0 %v420, 124
      %v601 = vpop.permute.xlu0 %600
      %602 = vrot.lane.b32.xlu0 %v425, 124
      %v603 = vpop.permute.xlu0 %602
      %604 = vrot.lane.b32.xlu0 %v430, 124
      %v605 = vpop.permute.xlu0 %604
      %606 = vrot.lane.b32.xlu0 %v435, 124
      %v607 = vpop.permute.xlu0 %606
      %608 = vrot.lane.b32.xlu0 %v440, 124
      %v609 = vpop.permute.xlu0 %608
      %610 = vrot.lane.b32.xlu0 %v445, 124
      %v611 = vpop.permute.xlu0 %610
      %612 = vrot.lane.b32.xlu0 %v450, 124
      %v613 = vpop.permute.xlu0 %612
      %614 = vrot.lane.b32.xlu0 %v455, 124
      %v615 = vpop.permute.xlu0 %614
      %616 = vrot.lane.b32.xlu0 %v460, 124
      %v617 = vpop.permute.xlu0 %616
      %618 = vrot.lane.b32.xlu0 %v465, 124
      %v619 = vpop.permute.xlu0 %618
      %620 = vrot.lane.b32.xlu0 %v470, 124
      %v621 = vpop.permute.xlu0 %620
      %622 = vrot.lane.b32.xlu0 %v475, 124
      %v623 = vpop.permute.xlu0 %622
      %624 = vrot.lane.b32.xlu0 %v480, 124
      %v625 = vpop.permute.xlu0 %624
      %626 = vrot.lane.b32.xlu0 %v485, 124
      %v627 = vpop.permute.xlu0 %626
      %628 = vrot.lane.b32.xlu0 %v490, 124
      %v629 = vpop.permute.xlu0 %628
      %630 = vrot.lane.b32.xlu0 %v495, 124
      %v631 = vpop.permute.xlu0 %630
      %632 = vrot.lane.b32.xlu0 %v500, 124
      %v633 = vpop.permute.xlu0 %632
      %634 = vrot.lane.b32.xlu0 %v505, 124
      %v635 = vpop.permute.xlu0 %634
      %s668 = scalar_lea.vmem %s147, 16
      %669 = vst.msk [vmem:[%s668] sm:$0xff] %vm182, %v573
      %670 = vst.msk [vmem:[%s668 + $0x8] sm:$0xff] %vm182, %v575
      %671 = vst.msk [vmem:[%s668 + $0x20] sm:$0xff] %vm182, %v577
      %672 = vst.msk [vmem:[%s668 + $0x28] sm:$0xff] %vm182, %v579
      %673 = vst.msk [vmem:[%s668 + $0x40] sm:$0xff] %vm182, %v581
      %674 = vst.msk [vmem:[%s668 + $0x48] sm:$0xff] %vm182, %v583
      %675 = vst.msk [vmem:[%s668 + $0x60] sm:$0xff] %vm182, %v585
      %676 = vst.msk [vmem:[%s668 + $0x68] sm:$0xff] %vm182, %v587
      %677 = vst.msk [vmem:[%s668 + $0x80] sm:$0xff] %vm182, %v589
      %678 = vst.msk [vmem:[%s668 + $0x88] sm:$0xff] %vm182, %v591
      %679 = vst.msk [vmem:[%s668 + $0xa0] sm:$0xff] %vm182, %v593
      %680 = vst.msk [vmem:[%s668 + $0xa8] sm:$0xff] %vm182, %v595
      %681 = vst.msk [vmem:[%s668 + $0xc0] sm:$0xff] %vm182, %v597
      %682 = vst.msk [vmem:[%s668 + $0xc8] sm:$0xff] %vm182, %v599
      %683 = vst.msk [vmem:[%s668 + $0xe0] sm:$0xff] %vm182, %v601
      %684 = vst.msk [vmem:[%s668 + $0xe8] sm:$0xff] %vm182, %v603
      %685 = vst.msk [vmem:[%s668 + $0x100] sm:$0xff] %vm182, %v605
      %686 = vst.msk [vmem:[%s668 + $0x108] sm:$0xff] %vm182, %v607
      %687 = vst.msk [vmem:[%s668 + $0x120] sm:$0xff] %vm182, %v609
      %688 = vst.msk [vmem:[%s668 + $0x128] sm:$0xff] %vm182, %v611
      %689 = vst.msk [vmem:[%s668 + $0x140] sm:$0xff] %vm182, %v613
      %690 = vst.msk [vmem:[%s668 + $0x148] sm:$0xff] %vm182, %v615
      %691 = vst.msk [vmem:[%s668 + $0x160] sm:$0xff] %vm182, %v617
      %692 = vst.msk [vmem:[%s668 + $0x168] sm:$0xff] %vm182, %v619
      %693 = vst.msk [vmem:[%s668 + $0x180] sm:$0xff] %vm182, %v621
      %694 = vst.msk [vmem:[%s668 + $0x188] sm:$0xff] %vm182, %v623
      %695 = vst.msk [vmem:[%s668 + $0x1a0] sm:$0xff] %vm182, %v625
      %696 = vst.msk [vmem:[%s668 + $0x1a8] sm:$0xff] %vm182, %v627
      %697 = vst.msk [vmem:[%s668 + $0x1c0] sm:$0xff] %vm182, %v629
      %698 = vst.msk [vmem:[%s668 + $0x1c8] sm:$0xff] %vm182, %v631
      %699 = vst.msk [vmem:[%s668 + $0x1e0] sm:$0xff] %vm182, %v633
      %700 = vst.msk [vmem:[%s668 + $0x1e8] sm:$0xff] %vm182, %v635
      %s701 = smul.u32 16, %s13
      %p702 = scmp.lt.s32.totalorder %s701, 31
      %s703 = scalar_select %p702, %s701, 31
      %s704 = smul.addr %s703, 4
      %s705 = smul.addr %s704, 8
      %s706 = scalar_lea.vmem %s2, %s705
      // Predicated region
      $region29: #{up_dsample_nhwc.1} parent=27 // pred_check
        %p707 = pneg %p78
      $region30: #{up_dsample_nhwc.1} parent=27 // pred_check_branch
        %709 = sbr.rel (%p707) target = $region32
      $region31: #{up_dsample_nhwc.1} parent=27 // pred_region
        %s710 = smul.u32 16, %s13
      $region32: #{up_dsample_nhwc.1} parent=27 // pred_fallthru
        _
    $region28: #{up_dsample_nhwc.1} parent=5 // pred_fallthru
      _
    %p711 = scmp.le.s32.totalorder 2, %s8
    // Predicated region
    $region33: #{up_dsample_nhwc.1} parent=5 // pred_check
      %p712 = pneg %p711
    $region34: #{up_dsample_nhwc.1} parent=5 // pred_check_branch
      %714 = sbr.rel (%p712) target = $region36
    $region35: #{up_dsample_nhwc.1} parent=5 // pred_region
      %s715 = ssub.s32 %s8, 2
      // Predicated region
      $region37: #{up_dsample_nhwc.1} parent=35 // pred_check
        %p716 = pneg %p84
      $region38: #{up_dsample_nhwc.1} parent=35 // pred_check_branch
        %718 = sbr.rel (%p716) target = $region40
      $region39: #{up_dsample_nhwc.1} parent=35 // pred_region
        %s719 = smul.u32 16, %s14
        %p720 = scmp.lt.s32.totalorder %s719, 31
        %s721 = scalar_select %p720, %s719, 31
        %s722 = smul.addr %s721, 4
        %s723 = smul.addr %s722, 8
        %s724 = scalar_lea.vmem %s2, %s723
      $region40: #{up_dsample_nhwc.1} parent=35 // pred_fallthru
        _
    $region36: #{up_dsample_nhwc.1} parent=5 // pred_fallthru
      _
  $region6: #{up_dsample_nhwc.1} parent=0 // loop_footer
    %s12 = sadd.s32 1, %s8
  $region7: #{up_dsample_nhwc.1} parent=0 // loop_footer_branch
    %7 = sbr.rel target = $region3
  $region8: #{up_dsample_nhwc.1} parent=0 // loop_exit
    _

</llo_original>
